<compile_context>
chip_gen: v5e
topology: v5e:2x2
jax: 0.10.0
libtpu: 0.0.40
codegen_flags: <defaults>
</compile_context>

<pallas_src>
import functools

import jax
import jax.numpy as jnp
from jax.experimental import pallas as pl
from jax.experimental.pallas import tpu as pltpu


def _round_up(x: int, m: int) -> int:
    return ((x + m - 1) // m) * m


def _tpu_generation():
    """Best-effort TPU generation detection: "v5e" | "v6e" | "v7x" | None."""
    try:
        kind = jax.devices()[0].device_kind.lower()
    except Exception:
        return None
    if "v7" in kind or "7x" in kind:
        return "v7x"
    if "v6" in kind:
        return "v6e"
    if "v5" in kind:
        return "v5e"
    return None


def _simple_rmsnorm_kernel(x_ref, o_ref, *, d: int, eps: float, groups: int,
                           mul_in_input_dtype: bool):
    # Block is (row_tile, groups * d).  Each physical row packs `groups`
    # independent logical rows of length d (groups == 1 => plain layout).
    # The segment loop is a small static unroll; all math stays exact f32
    # (VPU/XLU only), sum-of-squares accumulated in f32 per segment.
    x = x_ref[...]
    scale = float(d) ** -0.5
    for j in range(groups):
        sl = slice(j * d, (j + 1) * d)
        xs = x[:, sl]
        xf = xs.astype(jnp.float32)
        ssq = jnp.sum(xf * xf, axis=-1, keepdims=True)          # (rows, 1)
        # Per-row reciprocal + broadcast multiply instead of a (rows, d)
        # divide.  approx=False keeps reference semantics (one extra rounding
        # vs. an exact divide).
        inv = pl.reciprocal(jnp.sqrt(ssq) * scale + eps)        # (rows, 1)
        if mul_in_input_dtype:
            # bf16 on v6e/v7x: native bf16 VALU, skip the f32 store temp.
            o_ref[:, sl] = xs * inv.astype(xs.dtype)
        else:
            o_ref[:, sl] = (xf * inv).astype(o_ref.dtype)


def _per_row_vmem_bytes(width: int, itemsize: int) -> int:
    """Resident VMEM bytes per block row: 2 in + 2 out double buffers (input
    dtype) plus ~2 f32-wide in-kernel temporaries, with the lane dim padded
    to a multiple of 128."""
    width_pad = _round_up(width, 128)
    return 4 * width_pad * itemsize + 2 * width_pad * 4


def _choose_row_tile(n_rows: int, width: int, itemsize: int,
                     vmem_budget_bytes: int) -> int:
    """Largest sublane-aligned row tile whose I/O double buffers + f32
    temporaries fit the VMEM budget."""
    sublane = max(8, 32 // itemsize)            # 8 f32 / 16 bf16 / 32 int8
    per_row = _per_row_vmem_bytes(width, itemsize)
    max_tile = max(sublane, (vmem_budget_bytes // per_row) // sublane * sublane)
    rows_rounded = _round_up(n_rows, sublane)
    return min(max_tile, rows_rounded)


def simple_rms_norm(x, *, eps: float = 1e-8, row_tile=None):
    """RMSNorm over the last axis of x (any leading shape), torch-equivalent:
       out = x / (||x||_2(dim=-1, keepdim) / sqrt(d) + eps)
    """
    orig_shape = x.shape
    d = orig_shape[-1]
    x2d = x.reshape(-1, d)
    n_rows = x2d.shape[0]
    itemsize = jnp.dtype(x.dtype).itemsize
    gen = _tpu_generation()

    # ---- small-d fast path: pack g = 128 // d logical rows per physical row
    # so the block's last dim is lane-dense (128).  Pure layout plumbing via a
    # contiguous reshape; the kernel does a segmented reduce per physical row.
    groups = 1
    if d < 128 and 128 % d == 0:
        g = 128 // d
        if n_rows % g == 0:
            groups = g
    # TODO(synk): for small d that does not divide 128 (or ragged n_rows), pad
    # rows in the wrapper instead of falling back to the masked-store path.
    n_prows = n_rows // groups
    width = groups * d
    xp = x2d.reshape(n_prows, width)

    # Generation-aware VMEM budgets (working-set budget, scoped-VMEM cap).
    if gen == "v7x":                      # 64 MiB physical VMEM per TC
        budget, vmem_cap = 40 << 20, 48 << 20
    elif gen in ("v5e", "v6e"):           # 128 MiB physical VMEM
        budget, vmem_cap = 56 << 20, 64 << 20
    else:                                 # unknown: stay conservative
        budget, vmem_cap = 24 << 20, 32 << 20

    if row_tile is None:
        row_tile = _choose_row_tile(n_prows, width, itemsize, budget)
        # v7x only: both TensorCores engage via CORE_PARALLEL, so trade some
        # block size for >= ~6 grid steps (3 per TC).  Single-TC v5e/v6e keep
        # the largest tile (fewer steps = less ~0.35 us/step overhead).
        if gen == "v7x" and pl.cdiv(n_prows, row_tile) < 6:
            sublane = max(8, 32 // itemsize)
            alt = (n_prows // 6) // sublane * sublane
            if alt >= sublane:
                row_tile = min(row_tile, alt)
    # Clamp: a tile covering the whole row axis uses the full-dim block form
    # (always legal); anything larger would rely on masking a block that
    # exceeds the array.
    row_tile = min(row_tile, max(n_prows, 1))

    grid = (pl.cdiv(n_prows, row_tile),)

    # Scoped-VMEM limit from the real (lane-padded, temp-inclusive) footprint.
    sublane = max(8, 32 // itemsize)
    used = _round_up(row_tile, sublane) * _per_row_vmem_bytes(width, itemsize)
    vmem_limit = int(min(vmem_cap, max(32 << 20, used + (4 << 20))))

    # Both v7x TCs only engage with CORE_PARALLEL semantics; plain "parallel"
    # is a measured near-no-op, so single-TC chips just use "arbitrary".
    if gen == "v7x" and hasattr(pltpu, "CORE_PARALLEL") and grid[0] >= 2:
        dim_sem = (pltpu.CORE_PARALLEL,)
    else:
        dim_sem = ("arbitrary",)

    mul_in_input_dtype = itemsize < 4 and gen in ("v6e", "v7x")

    kernel = functools.partial(
        _simple_rmsnorm_kernel, d=d, eps=eps, groups=groups,
        mul_in_input_dtype=mul_in_input_dtype)

    # TODO(synk): for very large d (row_tile forced below ~128 rows) split d
    # onto a second "arbitrary" grid axis with a (row_tile, 1) f32 ssq
    # accumulator (init/finalize via pl.when) instead of shrinking row_tile.
    out = pl.pallas_call(
        kernel,
        out_shape=jax.ShapeDtypeStruct((n_prows, width), x.dtype),
        grid_spec=pltpu.PrefetchScalarGridSpec(
            num_scalar_prefetch=0,
            grid=grid,
            in_specs=[pl.BlockSpec((row_tile, width), lambda i: (i, 0))],
            out_specs=pl.BlockSpec((row_tile, width), lambda i: (i, 0)),
        ),
        compiler_params=pltpu.CompilerParams(
            dimension_semantics=dim_sem,
            vmem_limit_bytes=vmem_limit,
        ),
    )(xp)

    return out.reshape(orig_shape)


def _reference(x, d, eps=1e-8):
    norm_x = jnp.linalg.norm(x.astype(jnp.float32), axis=-1, keepdims=True)
    rms_x = norm_x * (float(d) ** -0.5)
    return (x / (rms_x + eps)).astype(x.dtype)


if __name__ == "__main__":
    key = jax.random.PRNGKey(0)
    batch, seq, d = 2, 8, 32  # module's `d` = model size = last dim
    x = jax.random.normal(key, (batch, seq, d), dtype=jnp.float32)

    out = simple_rms_norm(x)
    out = jax.block_until_ready(out)

    ref = _reference(x, d)
    assert out.shape == x.shape and out.dtype == x.dtype
    assert jnp.allclose(out, ref, atol=1e-5, rtol=1e-5), float(
        jnp.max(jnp.abs(out.astype(jnp.float32) - ref.astype(jnp.float32))))

    print("KERNEL_OK")
</pallas_src>

<mosaic_0001>
module attributes {stable_mosaic.version = 11 : i64} {
  func.func @_simple_rmsnorm_kernel(%arg0: i32, %arg1: memref<4x128xf32, #tpu.memory_space<vmem>>, %arg2: memref<4x128xf32, #tpu.memory_space<vmem>>) attributes {dimension_semantics = [#tpu.dimension_semantics<arbitrary>], iteration_bounds = array<i64: 1>, scalar_prefetch = 0 : i64, scratch_operands = 0 : i64, tpu.core_type = #tpu.core_type<tc>, window_params = [{transform_indices = @transform_0, window_bounds = array<i64: 4, 128>}, {transform_indices = @transform_1, window_bounds = array<i64: 4, 128>}]} {
    %c0 = arith.constant 0 : index
    %c0_0 = arith.constant 0 : index
    %0 = vector.load %arg1[%c0, %c0_0] : memref<4x128xf32, #tpu.memory_space<vmem>>, vector<4x128xf32>
    %1 = vector.extract_strided_slice %0 {offsets = [0, 0], sizes = [4, 32], strides = [1, 1]} : vector<4x128xf32> to vector<4x32xf32>
    %2 = arith.mulf %1, %1 : vector<4x32xf32>
    %cst = arith.constant dense<0.000000e+00> : vector<4xf32>
    %3 = vector.multi_reduction <add>, %2, %cst [1] : vector<4x32xf32> to vector<4xf32>
    %4 = vector.shape_cast %3 : vector<4xf32> to vector<4x1xf32>
    %5 = math.sqrt %4 : vector<4x1xf32>
    %cst_1 = arith.constant 0.176776692 : f32
    %6 = vector.broadcast %cst_1 : f32 to vector<4x1xf32>
    %7 = arith.mulf %5, %6 : vector<4x1xf32>
    %cst_2 = arith.constant 9.99999993E-9 : f32
    %8 = vector.broadcast %cst_2 : f32 to vector<4x1xf32>
    %9 = arith.addf %7, %8 : vector<4x1xf32>
    %10 = tpu.reciprocal %9 : vector<4x1xf32> -> vector<4x1xf32>
    %11 = vector.broadcast %10 : vector<4x1xf32> to vector<4x32xf32>
    %12 = arith.mulf %1, %11 : vector<4x32xf32>
    %c0_3 = arith.constant 0 : index
    %c0_4 = arith.constant 0 : index
    %13 = vector.load %arg2[%c0_3, %c0_4] : memref<4x128xf32, #tpu.memory_space<vmem>>, vector<4x32xf32>
    tpu.vector_store %arg2[%c0_3, %c0_4], %12 {strides = array<i32>} : memref<4x128xf32, #tpu.memory_space<vmem>>, vector<4x32xf32>,
    %14 = vector.extract_strided_slice %0 {offsets = [0, 32], sizes = [4, 32], strides = [1, 1]} : vector<4x128xf32> to vector<4x32xf32>
    %15 = arith.mulf %14, %14 : vector<4x32xf32>
    %cst_5 = arith.constant dense<0.000000e+00> : vector<4xf32>
    %16 = vector.multi_reduction <add>, %15, %cst_5 [1] : vector<4x32xf32> to vector<4xf32>
    %17 = vector.shape_cast %16 : vector<4xf32> to vector<4x1xf32>
    %18 = math.sqrt %17 : vector<4x1xf32>
    %cst_6 = arith.constant 0.176776692 : f32
    %19 = vector.broadcast %cst_6 : f32 to vector<4x1xf32>
    %20 = arith.mulf %18, %19 : vector<4x1xf32>
    %cst_7 = arith.constant 9.99999993E-9 : f32
    %21 = vector.broadcast %cst_7 : f32 to vector<4x1xf32>
    %22 = arith.addf %20, %21 : vector<4x1xf32>
    %23 = tpu.reciprocal %22 : vector<4x1xf32> -> vector<4x1xf32>
    %24 = vector.broadcast %23 : vector<4x1xf32> to vector<4x32xf32>
    %25 = arith.mulf %14, %24 : vector<4x32xf32>
    %c0_8 = arith.constant 0 : index
    %c32 = arith.constant 32 : index
    %26 = vector.load %arg2[%c0_8, %c32] : memref<4x128xf32, #tpu.memory_space<vmem>>, vector<4x32xf32>
    tpu.vector_store %arg2[%c0_8, %c32], %25 {strides = array<i32>} : memref<4x128xf32, #tpu.memory_space<vmem>>, vector<4x32xf32>,
    %27 = vector.extract_strided_slice %0 {offsets = [0, 64], sizes = [4, 32], strides = [1, 1]} : vector<4x128xf32> to vector<4x32xf32>
    %28 = arith.mulf %27, %27 : vector<4x32xf32>
    %cst_9 = arith.constant dense<0.000000e+00> : vector<4xf32>
    %29 = vector.multi_reduction <add>, %28, %cst_9 [1] : vector<4x32xf32> to vector<4xf32>
    %30 = vector.shape_cast %29 : vector<4xf32> to vector<4x1xf32>
    %31 = math.sqrt %30 : vector<4x1xf32>
    %cst_10 = arith.constant 0.176776692 : f32
    %32 = vector.broadcast %cst_10 : f32 to vector<4x1xf32>
    %33 = arith.mulf %31, %32 : vector<4x1xf32>
    %cst_11 = arith.constant 9.99999993E-9 : f32
    %34 = vector.broadcast %cst_11 : f32 to vector<4x1xf32>
    %35 = arith.addf %33, %34 : vector<4x1xf32>
    %36 = tpu.reciprocal %35 : vector<4x1xf32> -> vector<4x1xf32>
    %37 = vector.broadcast %36 : vector<4x1xf32> to vector<4x32xf32>
    %38 = arith.mulf %27, %37 : vector<4x32xf32>
    %c0_12 = arith.constant 0 : index
    %c64 = arith.constant 64 : index
    %39 = vector.load %arg2[%c0_12, %c64] : memref<4x128xf32, #tpu.memory_space<vmem>>, vector<4x32xf32>
    tpu.vector_store %arg2[%c0_12, %c64], %38 {strides = array<i32>} : memref<4x128xf32, #tpu.memory_space<vmem>>, vector<4x32xf32>,
    %40 = vector.extract_strided_slice %0 {offsets = [0, 96], sizes = [4, 32], strides = [1, 1]} : vector<4x128xf32> to vector<4x32xf32>
    %41 = arith.mulf %40, %40 : vector<4x32xf32>
    %cst_13 = arith.constant dense<0.000000e+00> : vector<4xf32>
    %42 = vector.multi_reduction <add>, %41, %cst_13 [1] : vector<4x32xf32> to vector<4xf32>
    %43 = vector.shape_cast %42 : vector<4xf32> to vector<4x1xf32>
    %44 = math.sqrt %43 : vector<4x1xf32>
    %cst_14 = arith.constant 0.176776692 : f32
    %45 = vector.broadcast %cst_14 : f32 to vector<4x1xf32>
    %46 = arith.mulf %44, %45 : vector<4x1xf32>
    %cst_15 = arith.constant 9.99999993E-9 : f32
    %47 = vector.broadcast %cst_15 : f32 to vector<4x1xf32>
    %48 = arith.addf %46, %47 : vector<4x1xf32>
    %49 = tpu.reciprocal %48 : vector<4x1xf32> -> vector<4x1xf32>
    %50 = vector.broadcast %49 : vector<4x1xf32> to vector<4x32xf32>
    %51 = arith.mulf %40, %50 : vector<4x32xf32>
    %c0_16 = arith.constant 0 : index
    %c96 = arith.constant 96 : index
    %52 = vector.load %arg2[%c0_16, %c96] : memref<4x128xf32, #tpu.memory_space<vmem>>, vector<4x32xf32>
    tpu.vector_store %arg2[%c0_16, %c96], %51 {strides = array<i32>} : memref<4x128xf32, #tpu.memory_space<vmem>>, vector<4x32xf32>,
    return
  }
  func.func @transform_0(%arg0: i32) -> (i32, i32) {
    %c0_i32 = arith.constant 0 : i32
    %c0_i32_0 = arith.constant 0 : i32
    return %arg0, %c0_i32 : i32, i32
  }
  func.func @transform_1(%arg0: i32) -> (i32, i32) {
    %c0_i32 = arith.constant 0 : i32
    %c0_i32_0 = arith.constant 0 : i32
    return %arg0, %c0_i32 : i32, i32
  }
}

</mosaic_0001>

<llo_original>
// kernel: tpu_custom_call.1
$region0: #{tpu_custom_call.1}
  #allocation0 [shape = 'u32[]', space=smem, size = 0x4, offset = 0x4, fixed_abs, tag = 'smem constant byte address 0x4 - core index']
  #allocation1 [shape = 'u32[72,128]{1,0:T(1,128)}', space=vmem, size = 0x9000, scoped, tag = 'internal scratch']
  %s0 = inlined_call_operand.hbm [shape: f32[4,128], index: 0, kind: input, shape index: {}]
  %s1 = inlined_call_operand.hbm [shape: f32[4,128], index: 1, kind: output, shape index: {}]
  %s2 = sld [smem:[#allocation0]]
  $region18: #{tpu_custom_call.1} parent=0
    _
  %s4 = ssub.s32 1, %s2
  %s5 = scalar_select 0, %s4, %s2
  $region1: #{tpu_custom_call.1} parent=0
    #allocation2 [shape = 'u8[2048]{0}', space=vmem, size = 0x800, scoped, tag = 'input window, operand 0, single buffered']
    #allocation3 [shape = 's32[1]{0}', space=sflag, size = 0x4, scoped, tag = 'scoped memory for tpu_custom_call.1']
    #allocation4 [shape = 's32[1]{0}', space=sflag, size = 0x4, scoped, tag = 'scoped memory for tpu_custom_call.1']
    #allocation5 [shape = 'u8[2048]{0}', space=vmem, size = 0x800, scoped, tag = 'output window, operand 0, single buffered']
    %6 = vsyncpa [#allocation3], 0
    %7 = vsyncpa [#allocation4], 0
    // Predicated region
    $region2: #{tpu_custom_call.1} parent=1 // pred_check
      _
    $region3: #{tpu_custom_call.1} parent=1 // pred_check_branch
      %9 = sbr.rel (0) target = $region5
    $region4: #{tpu_custom_call.1} parent=1 // pred_region
      %11 = vsyncadd [#allocation3], 0
      %s13 = sshll.u32 %s0, 4
      %s14 = int_to_ptr.hbm [resolvable:$true] %s13
      %s15 = sshll.u32 [#allocation2], 4
      %s16 = int_to_ptr.vmem [resolvable:$true] %s15
      %18 = dma.hbm_to_vmem [thread:$0]  %s14, 64, %s16, [#allocation3]
    $region5: #{tpu_custom_call.1} parent=1 // pred_fallthru
      _
    // Predicated region
    $region6: #{tpu_custom_call.1} parent=1 // pred_check
      _
    $region7: #{tpu_custom_call.1} parent=1 // pred_check_branch
      %20 = sbr.rel (0) target = $region9
    $region8: #{tpu_custom_call.1} parent=1 // pred_region
      %22 = dma.done [#allocation3], 64
    $region9: #{tpu_custom_call.1} parent=1 // pred_fallthru
      _
    %v23 = vld [vmem:[#allocation2] sm:$0xf]
    %v24 = vmul.f32 %v23, %v23
    %vm25 = vcmask 257024
    %v26 = vsel %vm25, %v24, 0.0
    %27 = vadd.xlane.f32.xlu0 %v26
    %v28 = vpop.xlane.xlu0 %27
    %v29 = vrsqrt.pop %v28
    %v30 = vmul.f32 %v29, %v28
    %v31 = vmul.f32 %v30, %v29
    %v32 = vmul.f32 0.5, %v31
    %v33 = vsub.f32 1.5, %v32
    %v34 = vmul.f32 %v29, %v33
    %v35 = vmul.f32 %v28, %v34
    %vm36 = vcmp.eq.f32.partialorder %v28, inf
    %v37 = vsel %vm36, %v28, %v35
    %vm38 = vcmp.eq.f32.partialorder %v28, 0.0
    %v39 = vand.u32 %v28, 2147483648
    %v40 = vsel %vm38, %v39, %v37
    %v41 = vmul.f32 %v40, 0.17677669
    %v42 = vadd.f32 %v41, 1e-08
    %v43 = vrcp.pop %v42
    %v44 = vmul.f32 %v42, %v43
    %v45 = vsub.f32 1.0, %v44
    %v46 = vmul.f32 %v43, %v45
    %v47 = vadd.f32 %v43, %v46
    %vm48 = vweird.f32 %v42
    %vm49 = vweird.f32 %v43
    %vm50 = vmor %vm48, %vm49
    %v51 = vsel %vm50, %v43, %v47
    %v52 = vand.u32 2147483647, %v42
    %vm53 = vcmp.eq.f32.partialorder %v52, 8.507059e+37
    %v54 = vand.u32 %v42, 2147483648
    %v55 = vor.u32 1.1754944e-38, %v54
    %v56 = vsel %vm53, %v55, %v51
    %v57 = vmul.f32 %v23, %v56
    %58 = vst.msk [vmem:[#allocation5] sm:$0xf] %vm25, %v57
    %60 = vrot.lane.b32.xlu0 %v24, 96
    %v61 = vpop.permute.xlu0 %60
    %v63 = vsel %vm25, %v61, 0.0
    %64 = vadd.xlane.f32.xlu0 %v63
    %v65 = vpop.xlane.xlu0 %64
    %v66 = vrsqrt.pop %v65
    %v67 = vmul.f32 %v66, %v65
    %v68 = vmul.f32 %v67, %v66
    %v69 = vmul.f32 0.5, %v68
    %v70 = vsub.f32 1.5, %v69
    %v71 = vmul.f32 %v66, %v70
    %v72 = vmul.f32 %v65, %v71
    %vm73 = vcmp.eq.f32.partialorder %v65, inf
    %v74 = vsel %vm73, %v65, %v72
    %vm75 = vcmp.eq.f32.partialorder %v65, 0.0
    %v76 = vand.u32 %v65, 2147483648
    %v77 = vsel %vm75, %v76, %v74
    %v78 = vmul.f32 %v77, 0.17677669
    %v79 = vadd.f32 %v78, 1e-08
    %v80 = vrcp.pop %v79
    %v81 = vmul.f32 %v79, %v80
    %v82 = vsub.f32 1.0, %v81
    %v83 = vmul.f32 %v80, %v82
    %v84 = vadd.f32 %v80, %v83
    %vm85 = vweird.f32 %v79
    %vm86 = vweird.f32 %v80
    %vm87 = vmor %vm85, %vm86
    %v88 = vsel %vm87, %v80, %v84
    %v89 = vand.u32 2147483647, %v79
    %vm90 = vcmp.eq.f32.partialorder %v89, 8.507059e+37
    %v91 = vand.u32 %v79, 2147483648
    %v92 = vor.u32 1.1754944e-38, %v91
    %v93 = vsel %vm90, %v92, %v88
    %v94 = vmul.f32 %v23, %v93
    %vm95 = vcmask 519424
    %96 = vst.msk [vmem:[#allocation5] sm:$0xf] %vm95, %v94
    %97 = vrot.lane.b32.xlu0 %v24, 64
    %v98 = vpop.permute.xlu0 %97
    %v100 = vsel %vm25, %v98, 0.0
    %101 = vadd.xlane.f32.xlu0 %v100
    %v102 = vpop.xlane.xlu0 %101
    %v103 = vrsqrt.pop %v102
    %v104 = vmul.f32 %v103, %v102
    %v105 = vmul.f32 %v104, %v103
    %v106 = vmul.f32 0.5, %v105
    %v107 = vsub.f32 1.5, %v106
    %v108 = vmul.f32 %v103, %v107
    %v109 = vmul.f32 %v102, %v108
    %vm110 = vcmp.eq.f32.partialorder %v102, inf
    %v111 = vsel %vm110, %v102, %v109
    %vm112 = vcmp.eq.f32.partialorder %v102, 0.0
    %v113 = vand.u32 %v102, 2147483648
    %v114 = vsel %vm112, %v113, %v111
    %v115 = vmul.f32 %v114, 0.17677669
    %v116 = vadd.f32 %v115, 1e-08
    %v117 = vrcp.pop %v116
    %v118 = vmul.f32 %v116, %v117
    %v119 = vsub.f32 1.0, %v118
    %v120 = vmul.f32 %v117, %v119
    %v121 = vadd.f32 %v117, %v120
    %vm122 = vweird.f32 %v116
    %vm123 = vweird.f32 %v117
    %vm124 = vmor %vm122, %vm123
    %v125 = vsel %vm124, %v117, %v121
    %v126 = vand.u32 2147483647, %v116
    %vm127 = vcmp.eq.f32.partialorder %v126, 8.507059e+37
    %v128 = vand.u32 %v116, 2147483648
    %v129 = vor.u32 1.1754944e-38, %v128
    %v130 = vsel %vm127, %v129, %v125
    %v131 = vmul.f32 %v23, %v130
    %vm132 = vcmask 781824
    %133 = vst.msk [vmem:[#allocation5] sm:$0xf] %vm132, %v131
    %134 = vrot.lane.b32.xlu0 %v24, 32
    %v135 = vpop.permute.xlu0 %134
    %v137 = vsel %vm25, %v135, 0.0
    %138 = vadd.xlane.f32.xlu0 %v137
    %v139 = vpop.xlane.xlu0 %138
    %v140 = vrsqrt.pop %v139
    %v141 = vmul.f32 %v140, %v139
    %v142 = vmul.f32 %v141, %v140
    %v143 = vmul.f32 0.5, %v142
    %v144 = vsub.f32 1.5, %v143
    %v145 = vmul.f32 %v140, %v144
    %v146 = vmul.f32 %v139, %v145
    %vm147 = vcmp.eq.f32.partialorder %v139, inf
    %v148 = vsel %vm147, %v139, %v146
    %vm149 = vcmp.eq.f32.partialorder %v139, 0.0
    %v150 = vand.u32 %v139, 2147483648
    %v151 = vsel %vm149, %v150, %v148
    %v152 = vmul.f32 %v151, 0.17677669
    %v153 = vadd.f32 %v152, 1e-08
    %v154 = vrcp.pop %v153
    %v155 = vmul.f32 %v153, %v154
    %v156 = vsub.f32 1.0, %v155
    %v157 = vmul.f32 %v154, %v156
    %v158 = vadd.f32 %v154, %v157
    %vm159 = vweird.f32 %v153
    %vm160 = vweird.f32 %v154
    %vm161 = vmor %vm159, %vm160
    %v162 = vsel %vm161, %v154, %v158
    %v163 = vand.u32 2147483647, %v153
    %vm164 = vcmp.eq.f32.partialorder %v163, 8.507059e+37
    %v165 = vand.u32 %v153, 2147483648
    %v166 = vor.u32 1.1754944e-38, %v165
    %v167 = vsel %vm164, %v166, %v162
    %v168 = vmul.f32 %v23, %v167
    %vm169 = vcmask 1044224
    %170 = vst.msk [vmem:[#allocation5] sm:$0xf] %vm169, %v168
    // Predicated region
    $region10: #{tpu_custom_call.1} parent=1 // pred_check
      _
    $region11: #{tpu_custom_call.1} parent=1 // pred_check_branch
      %172 = sbr.rel (0) target = $region13
    $region12: #{tpu_custom_call.1} parent=1 // pred_region
      %174 = vsyncadd [#allocation4], 0
      %s176 = sshll.u32 [#allocation5], 4
      %s177 = int_to_ptr.vmem [resolvable:$true] %s176
      %s178 = sshll.u32 %s1, 4
      %s179 = int_to_ptr.hbm [resolvable:$true] %s178
      %181 = dma.vmem_to_hbm [thread:$0]  %s177, 64, %s179, [#allocation4]
    $region13: #{tpu_custom_call.1} parent=1 // pred_fallthru
      _
    // Predicated region
    $region14: #{tpu_custom_call.1} parent=1 // pred_check
      _
    $region15: #{tpu_custom_call.1} parent=1 // pred_check_branch
      %183 = sbr.rel (0) target = $region17
    $region16: #{tpu_custom_call.1} parent=1 // pred_region
      %185 = dma.done [#allocation4], 64
    $region17: #{tpu_custom_call.1} parent=1 // pred_fallthru
      _
    %186 = vsyncpa [#allocation3], 1
    %187 = vsyncpa [#allocation4], 1

</llo_original>
